<compile_context>
chip_gen: v6e
topology: v6e:2x2x1
jax: 0.10.0
libtpu: 0.0.40
codegen_flags: <defaults>
</compile_context>

<pallas_src>
import functools

import jax
import jax.numpy as jnp
from jax import lax
from jax.experimental import pallas as pl
from jax.experimental.pallas import tpu as pltpu

BN_EPS = 1e-5
LANE = 128


def _round_up(v, m):
    return ((v + m - 1) // m) * m


def _pick_tile_n(n):
    for cand in (512, 256, 128, 64, 32, 16, 8):
        if n >= cand and n % cand == 0:
            return cand
    return n  # single tile fallback (see ragged-N TODO above)


def mlp_layer_kernel(x_ref, w1t_ref, w2t_ref, gb_ref, o_ref,
                     stats_ref, affine_ref, *, inv_n):
    """Two-phase fused MLP layer.

    grid = (2, num_n_tiles). Phase 0 accumulates global (training-mode)
    BatchNorm statistics; phase 1 applies the fused BN affine + ReLU + second
    linear. matmul1 is recomputed in phase 1 so no (N, H) intermediate is
    ever materialized in HBM or VMEM.
    """
    phase = pl.program_id(0)
    t = pl.program_id(1)
    last_t = pl.num_programs(1) - 1

    # ---- Linear 1: (tile_n, Din_pad) @ (Din_pad, H_pad), bf16 MXU, f32 acc ----
    x_bf = x_ref[...].astype(jnp.bfloat16)
    h = lax.dot_general(
        x_bf, w1t_ref[...],
        dimension_numbers=(((1,), (0,)), ((), ())),
        preferred_element_type=jnp.float32)               # (tile_n, H_pad) f32

    @pl.when(phase == 0)
    def _phase0():
        @pl.when(t == 0)
        def _init():
            stats_ref[...] = jnp.zeros_like(stats_ref)

        # Batch reductions on the MXU (which is otherwise idle between the two
        # matmuls) instead of cross-sublane XLU reductions:
        #   sum_h = ones(1, tile_n) @ h ; sum_h2 = ones(1, tile_n) @ (h * h)
        ones_row = jnp.ones((1, h.shape[0]), jnp.float32)
        s1 = lax.dot_general(ones_row, h,
                             dimension_numbers=(((1,), (0,)), ((), ())),
                             preferred_element_type=jnp.float32)   # (1, H_pad)
        s2 = lax.dot_general(ones_row, h * h,
                             dimension_numbers=(((1,), (0,)), ((), ())),
                             preferred_element_type=jnp.float32)   # (1, H_pad)
        stats_ref[...] += jnp.concatenate([s1, s2], axis=0)

        @pl.when(t == last_t)
        def _finalize_stats():
            sums = stats_ref[...]                          # (2, H_pad)
            mean = sums[0:1, :] * inv_n                    # (1, H_pad)
            msq = sums[1:2, :] * inv_n
            # NOTE: E[h^2] - E[h]^2 in f32; fine here, switch to a centered
            # two-pass variance if inputs can have |mean| >> std.
            var = jnp.maximum(msq - mean * mean, 0.0)      # biased variance
            inv = lax.rsqrt(var + BN_EPS)                  # EUP rsqrt
            gb = gb_ref[...]                               # (2, H_pad): gamma; beta
            scale = gb[0:1, :] * inv
            shift = gb[1:2, :] - mean * scale
            affine_ref[...] = jnp.concatenate([scale, shift], axis=0)

    @pl.when(phase == 1)
    def _phase1():
        aff = affine_ref[...]                              # (2, H_pad)
        h_bn = h * aff[0:1, :] + aff[1:2, :]               # single FMA / element
        h_act = jnp.maximum(h_bn, 0.0).astype(jnp.bfloat16)

        # ---- Linear 2: (tile_n, H_pad) @ (H_pad, Dout_pad) ----
        out = lax.dot_general(
            h_act, w2t_ref[...],
            dimension_numbers=(((1,), (0,)), ((), ())),
            preferred_element_type=jnp.float32)            # (tile_n, Dout_pad)
        o_ref[...] = out.astype(o_ref.dtype)               # lane-dense, unmasked vst


def prepare_params(w1, w2, gamma, beta):
    """One-time parameter prep (outside the hot path).

    PyTorch layouts in: w1 (H, Din), w2 (Dout, H), gamma/beta (H,).
    Produces lane-padded, pre-transposed, bf16 weight tiles and a merged
    (2, H_pad) f32 gamma/beta array. Zero padding along H guarantees padded
    hidden lanes contribute exactly 0 to the output.
    """
    hid, din = w1.shape
    dout = w2.shape[0]
    din_pad = _round_up(din, LANE)
    h_pad = _round_up(hid, LANE)
    dout_pad = _round_up(dout, LANE)

    w1t = jnp.zeros((din_pad, h_pad), jnp.bfloat16)
    w1t = w1t.at[:din, :hid].set(w1.T.astype(jnp.bfloat16))      # (Din_pad, H_pad)
    w2t = jnp.zeros((h_pad, dout_pad), jnp.bfloat16)
    w2t = w2t.at[:hid, :dout].set(w2.T.astype(jnp.bfloat16))     # (H_pad, Dout_pad)
    gb = jnp.zeros((2, h_pad), jnp.float32)
    gb = gb.at[0, :hid].set(gamma.astype(jnp.float32))
    gb = gb.at[1, :hid].set(beta.astype(jnp.float32))

    return {
        "w1t": w1t, "w2t": w2t, "gb": gb,
        "din": din, "din_pad": din_pad,
        "hid": hid, "h_pad": h_pad,
        "dout": dout, "dout_pad": dout_pad,
    }


def mlp_layer_forward(x, params, *, tile_n=None):
    """x: (N, Din) float32, or already lane-padded (N, Din_pad).

    Returns the lane-dense padded output (N, Dout_pad); columns >= Dout are
    exactly 0. Keep the padded layout end-to-end where possible; slicing to
    (N, Dout) is a separate XLA copy.
    """
    n = x.shape[0]
    din, din_pad = params["din"], params["din_pad"]
    h_pad, dout_pad = params["h_pad"], params["dout_pad"]

    if x.shape[1] == din_pad:
        x_pad = x
    else:
        assert x.shape[1] == din
        # TODO(synk): have the upstream producer emit Din_pad-padded activations
        # directly so this per-call pad disappears.
        x_pad = jnp.pad(x, ((0, 0), (0, din_pad - din)))

    if tile_n is None:
        tile_n = _pick_tile_n(n)
    assert n % tile_n == 0, "N must be a multiple of tile_n (see ragged-N TODO)"
    num_tiles = n // tile_n

    # VMEM budget from the actual block shapes (x/out double-buffered, weights
    # and gamma/beta resident) plus headroom; fits v7x's 64 MiB VMEM since only
    # O(tile_n * 128) activations are live at a time.
    blk_bytes = (2 * (tile_n * din_pad * 4 + tile_n * dout_pad * 4)   # x, out (2 bufs)
                 + (din_pad * h_pad + h_pad * dout_pad) * 2           # bf16 weights
                 + 2 * h_pad * 4                                      # gamma/beta
                 + 2 * (2 * h_pad * 4))                               # VMEM scratch
    vmem_limit = min(int(blk_bytes * 1.5) + (8 << 20), 100 << 20)

    flops = (2 * 2 * n * din_pad * h_pad      # matmul1 (computed in both phases)
             + 2 * n * h_pad * dout_pad       # matmul2
             + 2 * 2 * n * h_pad)             # MXU stats reductions
    cost = pl.CostEstimate(
        flops=flops,
        transcendentals=h_pad,                # rsqrt
        bytes_accessed=(2 * n * din_pad * 4   # x read in both phases
                        + (din_pad * h_pad + h_pad * dout_pad) * 2
                        + 2 * h_pad * 4
                        + n * dout_pad * 4))

    kernel = functools.partial(mlp_layer_kernel, inv_n=1.0 / float(n))

    out_pad = pl.pallas_call(
        kernel,
        out_shape=jax.ShapeDtypeStruct((n, dout_pad), x.dtype),
        grid_spec=pltpu.PrefetchScalarGridSpec(
            num_scalar_prefetch=0,
            grid=(2, num_tiles),              # (phase, n-tile)
            in_specs=[
                pl.BlockSpec((tile_n, din_pad), lambda p, t: (t, 0)),
                pl.BlockSpec((din_pad, h_pad), lambda p, t: (0, 0)),
                pl.BlockSpec((h_pad, dout_pad), lambda p, t: (0, 0)),
                pl.BlockSpec((2, h_pad), lambda p, t: (0, 0)),
            ],
            # Phase 0 parks the (unwritten) output window on block 0 so no
            # garbage tiles are ever flushed to HBM; phase 1 walks the tiles.
            out_specs=pl.BlockSpec((tile_n, dout_pad), lambda p, t: (p * t, 0)),
            scratch_shapes=[
                pltpu.VMEM((2, h_pad), jnp.float32),   # [sum_h ; sum_h2]
                pltpu.VMEM((2, h_pad), jnp.float32),   # [scale ; shift]
            ],
        ),
        # Both axes must stay sequential: phase 1 depends on the global stats
        # accumulated across all tiles in phase 0 (see v7x TODO above).
        compiler_params=pltpu.CompilerParams(
            dimension_semantics=("arbitrary", "arbitrary"),
            vmem_limit_bytes=vmem_limit),
        cost_estimate=cost,
    )(x_pad, params["w1t"], params["w2t"], params["gb"])

    return out_pad


def reference_forward(x, w1, w2, gamma, beta):
    """Pure-JAX f32 reference mirroring the PyTorch forward (training-mode BN)."""
    h = x @ w1.T
    mean = jnp.mean(h, axis=0, keepdims=True)
    var = jnp.mean((h - mean) ** 2, axis=0, keepdims=True)  # biased
    h = (h - mean) / jnp.sqrt(var + BN_EPS)
    h = h * gamma.reshape(1, -1) + beta.reshape(1, -1)
    h = jnp.maximum(h, 0.0)
    return h @ w2.T


if __name__ == "__main__":
    # Small shapes consistent with the module's forward: x is (batch, input_dim).
    N, INPUT_DIM, HIDDEN_DIM, OUTPUT_DIM = 8, 32, 32, 16

    key = jax.random.PRNGKey(0)
    kx, kw1, kw2, kg, kb = jax.random.split(key, 5)

    x = jax.random.normal(kx, (N, INPUT_DIM), dtype=jnp.float32)

    # PyTorch-layout weights: (out_features, in_features).
    w1 = jax.random.uniform(
        kw1, (HIDDEN_DIM, INPUT_DIM), dtype=jnp.float32,
        minval=-1.0 / jnp.sqrt(INPUT_DIM), maxval=1.0 / jnp.sqrt(INPUT_DIM))
    w2 = jax.random.uniform(
        kw2, (OUTPUT_DIM, HIDDEN_DIM), dtype=jnp.float32,
        minval=-1.0 / jnp.sqrt(HIDDEN_DIM), maxval=1.0 / jnp.sqrt(HIDDEN_DIM))
    # Non-trivial BN affine so the fused scale/shift path is actually exercised.
    gamma = 1.0 + 0.1 * jax.random.normal(kg, (HIDDEN_DIM,), dtype=jnp.float32)
    beta = 0.1 * jax.random.normal(kb, (HIDDEN_DIM,), dtype=jnp.float32)

    # One-time parameter preparation (outside the hot path).
    params = prepare_params(w1, w2, gamma, beta)

    out_pad = mlp_layer_forward(x, params)
    out_pad = jax.block_until_ready(out_pad)
    assert out_pad.shape == (N, params["dout_pad"])

    # Narrow view only for the correctness check; production consumers should
    # keep the lane-dense padded layout end-to-end.
    out = out_pad[:, :OUTPUT_DIM]

    ref = reference_forward(x, w1, w2, gamma, beta)
    max_err = float(jnp.max(jnp.abs(out - ref)))
    # bf16 MXU operands (f32 accumulation) vs an all-f32 reference -> loosened tol.
    assert jnp.allclose(out, ref, atol=5e-2, rtol=5e-2), (
        f"mismatch vs JAX reference, max|err|={max_err}")
    # Padded output lanes must be exactly zero (zero-padded W2 columns).
    assert bool(jnp.all(out_pad[:, OUTPUT_DIM:] == 0.0))

    print("KERNEL_OK")
</pallas_src>

<mosaic_0001>
module attributes {stable_mosaic.version = 11 : i64} {
  func.func @mlp_layer_kernel(%arg0: i32, %arg1: i32, %arg2: memref<8x128xf32, #tpu.memory_space<vmem>>, %arg3: memref<128x128xbf16, #tpu.memory_space<vmem>>, %arg4: memref<128x128xbf16, #tpu.memory_space<vmem>>, %arg5: memref<2x128xf32, #tpu.memory_space<vmem>>, %arg6: memref<8x128xf32, #tpu.memory_space<vmem>>, %arg7: memref<2x128xf32, #tpu.memory_space<vmem>>, %arg8: memref<2x128xf32, #tpu.memory_space<vmem>>) attributes {dimension_semantics = [#tpu.dimension_semantics<arbitrary>, #tpu.dimension_semantics<arbitrary>], iteration_bounds = array<i64: 2, 1>, scalar_prefetch = 0 : i64, scratch_operands = 2 : i64, tpu.core_type = #tpu.core_type<tc>, window_params = [{transform_indices = @transform_0, window_bounds = array<i64: 8, 128>}, {pipeline_mode = #tpu.pipeline_mode<synchronous>, transform_indices = @transform_1, window_bounds = array<i64: 128, 128>}, {pipeline_mode = #tpu.pipeline_mode<synchronous>, transform_indices = @transform_2, window_bounds = array<i64: 128, 128>}, {pipeline_mode = #tpu.pipeline_mode<synchronous>, transform_indices = @transform_3, window_bounds = array<i64: 2, 128>}, {transform_indices = @transform_4, window_bounds = array<i64: 8, 128>}]} {
    %c0 = arith.constant 0 : index
    %c0_0 = arith.constant 0 : index
    %0 = vector.load %arg2[%c0, %c0_0] : memref<8x128xf32, #tpu.memory_space<vmem>>, vector<8x128xf32>
    %1 = arith.truncf %0 : vector<8x128xf32> to vector<8x128xbf16>
    %c0_1 = arith.constant 0 : index
    %c0_2 = arith.constant 0 : index
    %2 = vector.load %arg3[%c0_1, %c0_2] : memref<128x128xbf16, #tpu.memory_space<vmem>>, vector<128x128xbf16>
    %cst = arith.constant dense<0.000000e+00> : vector<8x128xf32>
    %3 = tpu.matmul %1, %2, %cst {dimension_numbers = #tpu.dot_dimension_numbers<[1], [0], [0], [1], [0, 0, 1, 1], [], []>} : vector<8x128xbf16>, vector<128x128xbf16>, vector<8x128xf32> -> vector<8x128xf32>
    %c0_i32 = arith.constant 0 : i32
    %4 = arith.cmpi eq, %arg0, %c0_i32 : i32
    %5 = arith.extui %4 : i1 to i32
    %c0_i32_3 = arith.constant 0 : i32
    %6 = arith.cmpi ne, %5, %c0_i32_3 : i32
    scf.if %6 {
      %c0_i32_5 = arith.constant 0 : i32
      %10 = arith.cmpi eq, %arg1, %c0_i32_5 : i32
      %11 = arith.extui %10 : i1 to i32
      %c0_i32_6 = arith.constant 0 : i32
      %12 = arith.cmpi ne, %11, %c0_i32_6 : i32
      scf.if %12 {
        %cst_16 = arith.constant 0.000000e+00 : f32
        %24 = vector.broadcast %cst_16 : f32 to vector<2x128xf32>
        %c0_17 = arith.constant 0 : index
        %c0_18 = arith.constant 0 : index
        %25 = vector.load %arg7[%c0_17, %c0_18] : memref<2x128xf32, #tpu.memory_space<vmem>>, vector<2x128xf32>
        tpu.vector_store %arg7[%c0_17, %c0_18], %24 {strides = array<i32>} : memref<2x128xf32, #tpu.memory_space<vmem>>, vector<2x128xf32>,
      } else {
      }
      %cst_7 = arith.constant 1.000000e+00 : f32
      %13 = vector.broadcast %cst_7 : f32 to vector<1x8xf32>
      %cst_8 = arith.constant dense<0.000000e+00> : vector<1x128xf32>
      %14 = tpu.matmul %13, %3, %cst_8 {dimension_numbers = #tpu.dot_dimension_numbers<[1], [0], [0], [1], [0, 0, 1, 1], [], []>} : vector<1x8xf32>, vector<8x128xf32>, vector<1x128xf32> -> vector<1x128xf32>
      %15 = arith.mulf %3, %3 : vector<8x128xf32>
      %cst_9 = arith.constant dense<0.000000e+00> : vector<1x128xf32>
      %16 = tpu.matmul %13, %15, %cst_9 {dimension_numbers = #tpu.dot_dimension_numbers<[1], [0], [0], [1], [0, 0, 1, 1], [], []>} : vector<1x8xf32>, vector<8x128xf32>, vector<1x128xf32> -> vector<1x128xf32>
      %c0_10 = arith.constant 0 : index
      %c0_11 = arith.constant 0 : index
      %17 = vector.load %arg7[%c0_10, %c0_11] : memref<2x128xf32, #tpu.memory_space<vmem>>, vector<2x128xf32>
      %18 = tpu.concatenate %14, %16 in 0 : vector<1x128xf32>, vector<1x128xf32> -> vector<2x128xf32>
      %19 = arith.addf %17, %18 : vector<2x128xf32>
      %c0_12 = arith.constant 0 : index
      %c0_13 = arith.constant 0 : index
      %20 = vector.load %arg7[%c0_12, %c0_13] : memref<2x128xf32, #tpu.memory_space<vmem>>, vector<2x128xf32>
      tpu.vector_store %arg7[%c0_12, %c0_13], %19 {strides = array<i32>} : memref<2x128xf32, #tpu.memory_space<vmem>>, vector<2x128xf32>,
      %c0_i32_14 = arith.constant 0 : i32
      %21 = arith.cmpi eq, %arg1, %c0_i32_14 : i32
      %22 = arith.extui %21 : i1 to i32
      %c0_i32_15 = arith.constant 0 : i32
      %23 = arith.cmpi ne, %22, %c0_i32_15 : i32
      scf.if %23 {
        %c0_16 = arith.constant 0 : index
        %c0_17 = arith.constant 0 : index
        %24 = vector.load %arg7[%c0_16, %c0_17] : memref<2x128xf32, #tpu.memory_space<vmem>>, vector<2x128xf32>
        %25 = vector.extract_strided_slice %24 {offsets = [0, 0], sizes = [1, 128], strides = [1, 1]} : vector<2x128xf32> to vector<1x128xf32>
        %cst_18 = arith.constant 1.250000e-01 : f32
        %26 = vector.broadcast %cst_18 : f32 to vector<1x128xf32>
        %27 = arith.mulf %25, %26 : vector<1x128xf32>
        %28 = vector.extract_strided_slice %24 {offsets = [1, 0], sizes = [1, 128], strides = [1, 1]} : vector<2x128xf32> to vector<1x128xf32>
        %cst_19 = arith.constant 1.250000e-01 : f32
        %29 = vector.broadcast %cst_19 : f32 to vector<1x128xf32>
        %30 = arith.mulf %28, %29 : vector<1x128xf32>
        %31 = arith.mulf %27, %27 : vector<1x128xf32>
        %32 = arith.subf %30, %31 : vector<1x128xf32>
        %cst_20 = arith.constant 0.000000e+00 : f32
        %33 = vector.broadcast %cst_20 : f32 to vector<1x128xf32>
        %34 = arith.maximumf %32, %33 : vector<1x128xf32>
        %cst_21 = arith.constant 9.99999974E-6 : f32
        %35 = vector.broadcast %cst_21 : f32 to vector<1x128xf32>
        %36 = arith.addf %34, %35 : vector<1x128xf32>
        %37 = math.rsqrt %36 : vector<1x128xf32>
        %c0_22 = arith.constant 0 : index
        %c0_23 = arith.constant 0 : index
        %38 = vector.load %arg5[%c0_22, %c0_23] : memref<2x128xf32, #tpu.memory_space<vmem>>, vector<2x128xf32>
        %39 = vector.extract_strided_slice %38 {offsets = [0, 0], sizes = [1, 128], strides = [1, 1]} : vector<2x128xf32> to vector<1x128xf32>
        %40 = arith.mulf %39, %37 : vector<1x128xf32>
        %41 = vector.extract_strided_slice %38 {offsets = [1, 0], sizes = [1, 128], strides = [1, 1]} : vector<2x128xf32> to vector<1x128xf32>
        %42 = arith.mulf %27, %40 : vector<1x128xf32>
        %43 = arith.subf %41, %42 : vector<1x128xf32>
        %44 = tpu.concatenate %40, %43 in 0 : vector<1x128xf32>, vector<1x128xf32> -> vector<2x128xf32>
        %c0_24 = arith.constant 0 : index
        %c0_25 = arith.constant 0 : index
        %45 = vector.load %arg8[%c0_24, %c0_25] : memref<2x128xf32, #tpu.memory_space<vmem>>, vector<2x128xf32>
        tpu.vector_store %arg8[%c0_24, %c0_25], %44 {strides = array<i32>} : memref<2x128xf32, #tpu.memory_space<vmem>>, vector<2x128xf32>,
      } else {
      }
    } else {
    }
    %c1_i32 = arith.constant 1 : i32
    %7 = arith.cmpi eq, %arg0, %c1_i32 : i32
    %8 = arith.extui %7 : i1 to i32
    %c0_i32_4 = arith.constant 0 : i32
    %9 = arith.cmpi ne, %8, %c0_i32_4 : i32
    scf.if %9 {
      %c0_5 = arith.constant 0 : index
      %c0_6 = arith.constant 0 : index
      %10 = vector.load %arg8[%c0_5, %c0_6] : memref<2x128xf32, #tpu.memory_space<vmem>>, vector<2x128xf32>
      %11 = vector.extract_strided_slice %10 {offsets = [0, 0], sizes = [1, 128], strides = [1, 1]} : vector<2x128xf32> to vector<1x128xf32>
      %12 = vector.broadcast %11 : vector<1x128xf32> to vector<8x128xf32>
      %13 = arith.mulf %3, %12 : vector<8x128xf32>
      %14 = vector.extract_strided_slice %10 {offsets = [1, 0], sizes = [1, 128], strides = [1, 1]} : vector<2x128xf32> to vector<1x128xf32>
      %15 = vector.broadcast %14 : vector<1x128xf32> to vector<8x128xf32>
      %16 = arith.addf %13, %15 : vector<8x128xf32>
      %cst_7 = arith.constant 0.000000e+00 : f32
      %17 = vector.broadcast %cst_7 : f32 to vector<8x128xf32>
      %18 = arith.maximumf %16, %17 : vector<8x128xf32>
      %19 = arith.truncf %18 : vector<8x128xf32> to vector<8x128xbf16>
      %c0_8 = arith.constant 0 : index
      %c0_9 = arith.constant 0 : index
      %20 = vector.load %arg4[%c0_8, %c0_9] : memref<128x128xbf16, #tpu.memory_space<vmem>>, vector<128x128xbf16>
      %cst_10 = arith.constant dense<0.000000e+00> : vector<8x128xf32>
      %21 = tpu.matmul %19, %20, %cst_10 {dimension_numbers = #tpu.dot_dimension_numbers<[1], [0], [0], [1], [0, 0, 1, 1], [], []>} : vector<8x128xbf16>, vector<128x128xbf16>, vector<8x128xf32> -> vector<8x128xf32>
      %c0_11 = arith.constant 0 : index
      %c0_12 = arith.constant 0 : index
      %22 = vector.load %arg6[%c0_11, %c0_12] : memref<8x128xf32, #tpu.memory_space<vmem>>, vector<8x128xf32>
      tpu.vector_store %arg6[%c0_11, %c0_12], %21 {strides = array<i32>} : memref<8x128xf32, #tpu.memory_space<vmem>>, vector<8x128xf32>,
    } else {
    }
    return
  }
  func.func @transform_0(%arg0: i32, %arg1: i32) -> (i32, i32) {
    %c0_i32 = arith.constant 0 : i32
    %c0_i32_0 = arith.constant 0 : i32
    return %arg1, %c0_i32 : i32, i32
  }
  func.func @transform_1(%arg0: i32, %arg1: i32) -> (i32, i32) {
    %c0_i32 = arith.constant 0 : i32
    %c0_i32_0 = arith.constant 0 : i32
    %c0_i32_1 = arith.constant 0 : i32
    return %c0_i32, %c0_i32_0 : i32, i32
  }
  func.func @transform_2(%arg0: i32, %arg1: i32) -> (i32, i32) {
    %c0_i32 = arith.constant 0 : i32
    %c0_i32_0 = arith.constant 0 : i32
    %c0_i32_1 = arith.constant 0 : i32
    return %c0_i32, %c0_i32_0 : i32, i32
  }
  func.func @transform_3(%arg0: i32, %arg1: i32) -> (i32, i32) {
    %c0_i32 = arith.constant 0 : i32
    %c0_i32_0 = arith.constant 0 : i32
    %c0_i32_1 = arith.constant 0 : i32
    return %c0_i32, %c0_i32_0 : i32, i32
  }
  func.func @transform_4(%arg0: i32, %arg1: i32) -> (i32, i32) {
    %0 = arith.muli %arg0, %arg1 : i32
    %c0_i32 = arith.constant 0 : i32
    %c0_i32_0 = arith.constant 0 : i32
    return %0, %c0_i32 : i32, i32
  }
}

</mosaic_0001>

<llo_original>
// kernel: tpu_custom_call.1
$region0: #{tpu_custom_call.1}
  #allocation0 [shape = 'u32[]', space=smem, size = 0x4, offset = 0x4, fixed_abs, tag = 'smem constant byte address 0x4 - core index']
  #allocation1 [shape = 'u32[144,128]{1,0:T(1,128)}', space=vmem, size = 0x12000, scoped, tag = 'internal scratch']
  #allocation2 [shape = 'f32[2,128]{1,0:T(2,128)}', space=vmem, size = 0x400, scoped, tag = 'scratch operand']
  #allocation3 [shape = 'f32[2,128]{1,0:T(2,128)}', space=vmem, size = 0x400, scoped, tag = 'scratch operand']
  %s0 = inlined_call_operand.hbm [shape: f32[8,128], index: 0, kind: input, shape index: {}]
  %s1 = inlined_call_operand.hbm [shape: bf16[128,128], index: 1, kind: input, shape index: {}]
  %s2 = inlined_call_operand.hbm [shape: bf16[128,128], index: 2, kind: input, shape index: {}]
  %s3 = inlined_call_operand.vmem [shape: f32[2,128], index: 3, kind: input, shape index: {}]
  %s4 = inlined_call_operand.hbm [shape: f32[8,128], index: 4, kind: output, shape index: {}]
  %s5 = sld [smem:[#allocation0]]
  $region77: #{tpu_custom_call.1} parent=0
    _
  %s7 = ssub.s32 1, %s5
  %s8 = scalar_select 0, %s7, %s5
  $region1: #{tpu_custom_call.1} parent=0
    #allocation4 [shape = 'u8[4096]{0}', space=vmem, size = 0x1000, scoped, tag = 'input window, operand 0, single buffered']
    #allocation5 [shape = 's32[2]{0}', space=sflag, size = 0x8, scoped, tag = 'scoped memory for tpu_custom_call.1']
    #allocation6 [shape = 's32[2]{0}', space=sflag, size = 0x8, scoped, tag = 'scoped memory for tpu_custom_call.1']
    #allocation7 [shape = 'u8[32768]{0}', space=vmem, size = 0x8000, scoped, tag = 'input window, operand 1, single buffered']
    #allocation8 [shape = 's32[1]{0}', space=sflag, size = 0x4, scoped, tag = 'scoped memory for tpu_custom_call.1']
    #allocation9 [shape = 'u8[32768]{0}', space=vmem, size = 0x8000, scoped, tag = 'input window, operand 2, single buffered']
    #allocation10 [shape = 'u8[8192]{0}', space=vmem, size = 0x2000, scoped, tag = 'output window, operand 0']
    %9 = vsyncpa [#allocation5], 0
    %10 = vsyncpa [#allocation8], 0
    %11 = vsyncpa [#allocation6], 0
    %s12 = scalar_lea.sflag [#allocation6], 1
    %13 = vsyncpa %s12, 0
    loop: start=0, step=1, limit=4
    $region2: #{tpu_custom_call.1} parent=1 // loop_pre_header
      _
    $region3: #{tpu_custom_call.1} parent=1 // loop_header
      %s15 = sphi 0, %s19
      %p16 = scmp.ge.s32.totalorder %s15, 4
      %s22 = sphi 0, %s34
      %s23 = sphi 0, %s30
      %s24 = sphi 0, %s22
      %s25 = sphi 0, %s23
      %s26 = sphi 0, %s24
      %s27 = sphi 0, %s25
      %s37 = sphi 0, %s39
      %s40 = sphi 0, %s37
      %s41 = sphi 0, %s40
      %s57 = sphi 0, %s41
      %s61 = sphi 0, %s61
      %s63 = sphi 0, %s61
      %s64 = sphi 0, %s63
      %s78 = sphi 0, %s64
      %s82 = sphi 0, %s82
      %s84 = sphi 0, %s82
      %s85 = sphi 0, %s84
      %s99 = sphi 0, %s85
      %s103 = sphi 0, %s103
      %s105 = sphi 0, %s103
      %s106 = sphi 0, %s105
      %s120 = sphi 0, %s106
      %s128 = sphi 0, %s130
      %s131 = sphi 0, %s128
      %s132 = sphi 0, %s131
      %s148 = sphi 0, %s132
    $region4: #{tpu_custom_call.1} parent=1 // loop_header_branch
      %18 = sbr.rel (%p16) target = $region8
    $region5: #{tpu_custom_call.1} parent=1 // loop_body
      %s20 = ssub.s32 %s15, 1
      %s21 = ssub.s32 %s15, 2
      %s28 = sadd.s32 1, %s23
      %p29 = scmp.ge.s32.totalorder %s28, 1
      %s30 = scalar_select %p29, 0, %s28
      %s31 = sadd.s32 1, %s22
      %s32 = scalar_select %p29, %s31, %s22
      %p33 = scmp.ge.s32.totalorder %s32, 2
      %s34 = scalar_select %p33, 0, %s32
      %s35 = ssub.s32 %s23, %s30
      %p36 = scmp.eq.s32.totalorder %s35, 0
      %s38 = sadd.s32 %s37, 1
      %s39 = scalar_select %p36, %s37, %s38
      %p42 = pneg %p36
      %p43 = scmp.eq.s32.totalorder %s15, 1
      %p44 = por %p42, %p43
      %p45 = scmp.ne.s32.totalorder %s37, %s40
      %p46 = scmp.eq.s32.totalorder %s15, 0
      %p47 = por %p45, %p46
      %p48 = scmp.ne.s32.totalorder %s37, %s40
      %p49 = scmp.eq.s32.totalorder %s20, 1
      %p50 = por %p48, %p49
      %p51 = scmp.ne.s32.totalorder %s40, %s41
      %p52 = scmp.eq.s32.totalorder %s20, 0
      %p53 = por %p51, %p52
      %p54 = scmp.ne.s32.totalorder %s40, %s41
      %p55 = scmp.eq.s32.totalorder %s21, 1
      %p56 = por %p54, %p55
      %p58 = scmp.ne.s32.totalorder %s41, %s57
      %p59 = scmp.eq.s32.totalorder %s21, 0
      %p60 = por %p58, %p59
      %s62 = sadd.s32 %s61, 1
      %p65 = scmp.eq.s32.totalorder %s15, 1
      %p66 = scmp.ne.s32.totalorder %s61, %s63
      %p67 = scmp.eq.s32.totalorder %s15, 0
      %p68 = por %p66, %p67
      %p69 = scmp.ne.s32.totalorder %s61, %s63
      %p70 = scmp.eq.s32.totalorder %s20, 1
      %p71 = por %p69, %p70
      %p72 = scmp.ne.s32.totalorder %s63, %s64
      %p73 = scmp.eq.s32.totalorder %s20, 0
      %p74 = por %p72, %p73
      %p75 = scmp.ne.s32.totalorder %s63, %s64
      %p76 = scmp.eq.s32.totalorder %s21, 1
      %p77 = por %p75, %p76
      %p79 = scmp.ne.s32.totalorder %s64, %s78
      %p80 = scmp.eq.s32.totalorder %s21, 0
      %p81 = por %p79, %p80
      %s83 = sadd.s32 %s82, 1
      %p86 = scmp.eq.s32.totalorder %s15, 1
      %p87 = scmp.ne.s32.totalorder %s82, %s84
      %p88 = scmp.eq.s32.totalorder %s15, 0
      %p89 = por %p87, %p88
      %p90 = scmp.ne.s32.totalorder %s82, %s84
      %p91 = scmp.eq.s32.totalorder %s20, 1
      %p92 = por %p90, %p91
      %p93 = scmp.ne.s32.totalorder %s84, %s85
      %p94 = scmp.eq.s32.totalorder %s20, 0
      %p95 = por %p93, %p94
      %p96 = scmp.ne.s32.totalorder %s84, %s85
      %p97 = scmp.eq.s32.totalorder %s21, 1
      %p98 = por %p96, %p97
      %p100 = scmp.ne.s32.totalorder %s85, %s99
      %p101 = scmp.eq.s32.totalorder %s21, 0
      %p102 = por %p100, %p101
      %s104 = sadd.s32 %s103, 1
      %p107 = scmp.eq.s32.totalorder %s15, 1
      %p108 = scmp.ne.s32.totalorder %s103, %s105
      %p109 = scmp.eq.s32.totalorder %s15, 0
      %p110 = por %p108, %p109
      %p111 = scmp.ne.s32.totalorder %s103, %s105
      %p112 = scmp.eq.s32.totalorder %s20, 1
      %p113 = por %p111, %p112
      %p114 = scmp.ne.s32.totalorder %s105, %s106
      %p115 = scmp.eq.s32.totalorder %s20, 0
      %p116 = por %p114, %p115
      %p117 = scmp.ne.s32.totalorder %s105, %s106
      %p118 = scmp.eq.s32.totalorder %s21, 1
      %p119 = por %p117, %p118
      %p121 = scmp.ne.s32.totalorder %s106, %s120
      %p122 = scmp.eq.s32.totalorder %s21, 0
      %p123 = por %p121, %p122
      %s124 = smul.u32 %s22, %s23
      %s125 = smul.u32 %s34, %s30
      %s126 = ssub.s32 %s124, %s125
      %p127 = scmp.eq.s32.totalorder %s126, 0
      %s129 = sadd.s32 %s128, 1
      %s130 = scalar_select %p127, %s128, %s129
      %p133 = pneg %p127
      %p134 = scmp.eq.s32.totalorder %s15, 1
      %p135 = por %p133, %p134
      %p136 = scmp.ne.s32.totalorder %s128, %s131
      %p137 = scmp.eq.s32.totalorder %s15, 0
      %p138 = por %p136, %p137
      %p139 = scmp.ne.s32.totalorder %s128, %s131
      %p140 = scmp.eq.s32.totalorder %s20, 1
      %p141 = por %p139, %p140
      %p142 = scmp.ne.s32.totalorder %s131, %s132
      %p143 = scmp.eq.s32.totalorder %s20, 0
      %p144 = por %p142, %p143
      %p145 = scmp.ne.s32.totalorder %s131, %s132
      %p146 = scmp.eq.s32.totalorder %s21, 1
      %p147 = por %p145, %p146
      %p149 = scmp.ne.s32.totalorder %s132, %s148
      %p150 = scmp.eq.s32.totalorder %s21, 0
      %p151 = por %p149, %p150
      %p152 = scmp.le.s32.totalorder 1, %s15
      %p153 = scmp.lt.s32.totalorder %s15, 3
      %p154 = pnand %p152, %p153
      %p155 = pneg %p154
      // Predicated region
      $region9: #{tpu_custom_call.1} parent=5 // pred_check
        _
      $region10: #{tpu_custom_call.1} parent=5 // pred_check_branch
        %157 = sbr.rel (%p154) target = $region12
      $region11: #{tpu_custom_call.1} parent=5 // pred_region
        %s158 = ssub.s32 %s15, 1
        // Predicated region
        $region13: #{tpu_custom_call.1} parent=11 // pred_check
          %p159 = pneg %p53
        $region14: #{tpu_custom_call.1} parent=11 // pred_check_branch
          %161 = sbr.rel (%p159) target = $region16
        $region15: #{tpu_custom_call.1} parent=11 // pred_region
          %s163 = ssub.s32 128, 128
          %164 = vsyncadd [#allocation5], %s163
          %s165 = smul.addr %s25, 128
          %s166 = scalar_lea.hbm %s0, %s165
          %s168 = sshll.u32 [#allocation4], 4
          %s169 = int_to_ptr.vmem [resolvable:$true] %s168
          %171 = dma.hbm_to_vmem [thread:$0]  %s166, 128, %s169, [#allocation5]
        $region16: #{tpu_custom_call.1} parent=11 // pred_fallthru
          _
        // Predicated region
        $region17: #{tpu_custom_call.1} parent=11 // pred_check
          %p172 = pneg %p74
        $region18: #{tpu_custom_call.1} parent=11 // pred_check_branch
          %174 = sbr.rel (%p172) target = $region20
        $region19: #{tpu_custom_call.1} parent=11 // pred_region
          %s176 = ssub.s32 1024, 1024
          %177 = vsyncadd [#allocation8], %s176
          %s178 = sshll.u32 [#allocation7], 4
          %s179 = int_to_ptr.vmem [resolvable:$true] %s178
          %184 = dma.hbm_to_vmem [thread:$0]  %s1, 1024, %s179, [#allocation8], 64, 64, 4
        $region20: #{tpu_custom_call.1} parent=11 // pred_fallthru
          _
        // Predicated region
        $region21: #{tpu_custom_call.1} parent=11 // pred_check
          %p185 = pneg %p95
        $region22: #{tpu_custom_call.1} parent=11 // pred_check_branch
          %187 = sbr.rel (%p185) target = $region24
        $region23: #{tpu_custom_call.1} parent=11 // pred_region
          %s189 = ssub.s32 1024, 1024
          %190 = vsyncadd [#allocation8], %s189
          %s191 = sshll.u32 [#allocation9], 4
          %s192 = int_to_ptr.vmem [resolvable:$true] %s191
          %197 = dma.hbm_to_vmem [thread:$0]  %s2, 1024, %s192, [#allocation8], 64, 64, 4
        $region24: #{tpu_custom_call.1} parent=11 // pred_fallthru
          _
        // Predicated region
        $region25: #{tpu_custom_call.1} parent=11 // pred_check
          %p198 = pneg %p116
        $region26: #{tpu_custom_call.1} parent=11 // pred_check_branch
          %200 = sbr.rel (%p198) target = $region28
        $region27: #{tpu_custom_call.1} parent=11 // pred_region
          _
        $region28: #{tpu_custom_call.1} parent=11 // pred_fallthru
          _
      $region12: #{tpu_custom_call.1} parent=5 // pred_fallthru
        _
      %p201 = scmp.lt.s32.totalorder %s15, 2
      // Predicated region
      $region29: #{tpu_custom_call.1} parent=5 // pred_check
        %p202 = pneg %p201
      $region30: #{tpu_custom_call.1} parent=5 // pred_check_branch
        %204 = sbr.rel (%p202) target = $region32
      $region31: #{tpu_custom_call.1} parent=5 // pred_region
        _
      $region32: #{tpu_custom_call.1} parent=5 // pred_fallthru
        _
      %p205 = scmp.le.s32.totalorder 1, %s15
      %p206 = scmp.lt.s32.totalorder %s15, 3
      %p207 = pnand %p205, %p206
      %p208 = pneg %p207
      // Predicated region
      $region33: #{tpu_custom_call.1} parent=5 // pred_check
        _
      $region34: #{tpu_custom_call.1} parent=5 // pred_check_branch
        %210 = sbr.rel (%p207) target = $region36
      $region35: #{tpu_custom_call.1} parent=5 // pred_region
        %s211 = ssub.s32 %s15, 1
        // Predicated region
        $region37: #{tpu_custom_call.1} parent=35 // pred_check
          %p212 = pneg %p53
        $region38: #{tpu_custom_call.1} parent=35 // pred_check_branch
          %214 = sbr.rel (%p212) target = $region40
        $region39: #{tpu_custom_call.1} parent=35 // pred_region
          %215 = dma.done [#allocation5], 128
        $region40: #{tpu_custom_call.1} parent=35 // pred_fallthru
          _
        // Predicated region
        $region41: #{tpu_custom_call.1} parent=35 // pred_check
          %p216 = pneg %p74
        $region42: #{tpu_custom_call.1} parent=35 // pred_check_branch
          %218 = sbr.rel (%p216) target = $region44
        $region43: #{tpu_custom_call.1} parent=35 // pred_region
          %219 = dma.done [#allocation8], 1024
        $region44: #{tpu_custom_call.1} parent=35 // pred_fallthru
          _
        // Predicated region
        $region45: #{tpu_custom_call.1} parent=35 // pred_check
          %p220 = pneg %p95
        $region46: #{tpu_custom_call.1} parent=35 // pred_check_branch
          %222 = sbr.rel (%p220) target = $region48
        $region47: #{tpu_custom_call.1} parent=35 // pred_region
          %223 = dma.done [#allocation8], 1024
        $region48: #{tpu_custom_call.1} parent=35 // pred_fallthru
          _
        %p224 = pneg %p53
        %p225 = pneg %p50
        %p226 = pneg %p74
        %p227 = pneg %p71
        %p228 = pneg %p95
        %p229 = pneg %p92
        %p230 = pneg %p116
        %p231 = pneg %p113
        %p232 = pneg %p144
        %p233 = pneg %p141
        %s234 = sand.u32 %s131, 1
        %s235 = scalar_lea.sflag [#allocation6], %s234
        %s236 = sand.u32 %s131, 1
        %s237 = smul.addr %s236, 8
        %s238 = scalar_lea.vmem [#allocation10], %s237
        %s239 = smul.u32 %s24, %s25
        %v241 = vld [vmem:[#allocation4] sm:$0xff]
        %v242 = vpack.c.bf16 %v241, %v241
        %v243 = vld [vmem:[#allocation7] sm:$0xf]
        %v244 = vld [vmem:[#allocation7 + $0x4] sm:$0xf]
        %v245 = vld [vmem:[#allocation7 + $0x8] sm:$0xf]
        %v246 = vld [vmem:[#allocation7 + $0xc] sm:$0xf]
        %v247 = vld [vmem:[#allocation7 + $0x10] sm:$0xf]
        %v248 = vld [vmem:[#allocation7 + $0x14] sm:$0xf]
        %v249 = vld [vmem:[#allocation7 + $0x18] sm:$0xf]
        %v250 = vld [vmem:[#allocation7 + $0x1c] sm:$0xf]
        %v251 = vld [vmem:[#allocation7 + $0x20] sm:$0xf]
        %v252 = vld [vmem:[#allocation7 + $0x24] sm:$0xf]
        %v253 = vld [vmem:[#allocation7 + $0x28] sm:$0xf]
        %v254 = vld [vmem:[#allocation7 + $0x2c] sm:$0xf]
        %v255 = vld [vmem:[#allocation7 + $0x30] sm:$0xf]
        %v256 = vld [vmem:[#allocation7 + $0x34] sm:$0xf]
        %v257 = vld [vmem:[#allocation7 + $0x38] sm:$0xf]
        %v258 = vld [vmem:[#allocation7 + $0x3c] sm:$0xf]
        %v275 = vunpack.c.l.b16 %v243
        %v276 = vunpack.c.l.b16 %v244
        %v277 = vunpack.c.l.b16 %v245
        %v278 = vunpack.c.l.b16 %v246
        %v279 = vunpack.c.l.b16 %v247
        %v280 = vunpack.c.l.b16 %v248
        %v281 = vunpack.c.l.b16 %v249
        %v282 = vunpack.c.l.b16 %v250
        %v283 = vunpack.c.l.b16 %v251
        %v284 = vunpack.c.l.b16 %v252
        %v285 = vunpack.c.l.b16 %v253
        %v286 = vunpack.c.l.b16 %v254
        %v287 = vunpack.c.l.b16 %v255
        %v288 = vunpack.c.l.b16 %v256
        %v289 = vunpack.c.l.b16 %v257
        %v290 = vunpack.c.l.b16 %v258
        %v291 = vpack.c.b16 %v276, %v275
        %v292 = vpack.c.b16 %v278, %v277
        %v293 = vpack.c.b16 %v280, %v279
        %v294 = vpack.c.b16 %v282, %v281
        %v295 = vpack.c.b16 %v284, %v283
        %v296 = vpack.c.b16 %v286, %v285
        %v297 = vpack.c.b16 %v288, %v287
        %v298 = vpack.c.b16 %v290, %v289
        %307 = vmatprep.subr.bf16.mxu0 0
        %308 = vmatpush1.bf16.msra.mxu0 %v298
        %309 = vmatprep.subr.bf16.mxu0 0
        %310 = vmatpush1.bf16.msra.mxu0 %v297
        %311 = vmatprep.subr.bf16.mxu0 0
        %312 = vmatpush1.bf16.msra.mxu0 %v296
        %313 = vmatprep.subr.bf16.mxu0 0
        %314 = vmatpush1.bf16.msra.mxu0 %v295
        %315 = vmatprep.subr.bf16.mxu0 0
        %316 = vmatpush1.bf16.msra.mxu0 %v294
        %317 = vmatprep.subr.bf16.mxu0 0
        %318 = vmatpush1.bf16.msra.mxu0 %v293
        %319 = vmatprep.subr.bf16.mxu0 0
        %320 = vmatpush1.bf16.msra.mxu0 %v292
        %321 = vmatprep.subr.bf16.mxu0 0
        %322 = vmatpush1.bf16.msra.mxu0 %v291
        %323 = vmatprep.subr.bf16.mxu0 0
        %324 = vmatpush2.bf16.msra.mxu0 0
        %325 = vmatprep.subr.bf16.mxu0 0
        %326 = vmatpush2.bf16.msra.mxu0 0
        %327 = vmatprep.subr.bf16.mxu0 0
        %328 = vmatpush2.bf16.msra.mxu0 0
        %329 = vmatprep.subr.bf16.mxu0 0
        %330 = vmatpush2.bf16.msra.mxu0 0
        %331 = vmatprep.subr.bf16.mxu0 0
        %332 = vmatpush2.bf16.msra.mxu0 0
        %333 = vmatprep.subr.bf16.mxu0 0
        %334 = vmatpush2.bf16.msra.mxu0 0
        %335 = vmatprep.subr.bf16.mxu0 0
        %336 = vmatpush2.bf16.msra.mxu0 0
        %337 = vmatprep.subr.bf16.mxu0 0
        %338 = vmatpush2.bf16.msra.mxu0 0
        %339 = vmatprep.mubr.bf16.mxu0 0
        %340 = vmatmul.mubr.bf16.gmra.mxu0 %v242
        %v341 = vpop.f32.mrf.mxu0
        %v342 = vadd.f32 0.0, %v341
        %v343 = vpop.f32.mrf.mxu0
        %v344 = vpop.f32.mrf.mxu0
        %v345 = vpop.f32.mrf.mxu0
        %346 = vdwg.mxu0
        %p347 = scmp.eq.s32.totalorder %s24, 0
        // Predicated region
        $region49: #{tpu_custom_call.1} parent=35 // pred_check
          %p348 = pneg %p347
        $region50: #{tpu_custom_call.1} parent=35 // pred_check_branch
          %350 = sbr.rel (%p348) target = $region52
        $region51: #{tpu_custom_call.1} parent=35 // pred_region
          %p351 = scmp.eq.s32.totalorder %s25, 0
          // Predicated region
          $region53: #{tpu_custom_call.1} parent=51 // pred_check
            %p352 = pneg %p351
          $region54: #{tpu_custom_call.1} parent=51 // pred_check_branch
            %354 = sbr.rel (%p352) target = $region56
          $region55: #{tpu_custom_call.1} parent=51 // pred_region
            %355 = vst [vmem:[#allocation2] sm:$0x3] 0.0
          $region56: #{tpu_custom_call.1} parent=51 // pred_fallthru
            _
          %vm356 = vcmask 64512
          %v358 = vsel %vm356, 1.0, 0
          %360 = vmatprep.subr.mxu0 0.0
          %361 = vmatpush1.msra.mxu0 0.0
          %362 = vmatprep.subr.mxu0 0.0
          %363 = vmatpush1.msra.mxu0 0.0
          %364 = vmatprep.subr.mxu0 0.0
          %365 = vmatpush1.msra.mxu0 0.0
          %366 = vmatprep.subr.mxu0 0.0
          %367 = vmatpush1.msra.mxu0 0.0
          %368 = vmatprep.subr.mxu0 0.0
          %369 = vmatpush1.msra.mxu0 0.0
          %370 = vmatprep.subr.mxu0 0.0
          %371 = vmatpush1.msra.mxu0 0.0
          %372 = vmatprep.subr.mxu0 0.0
          %373 = vmatpush1.msra.mxu0 0.0
          %374 = vmatprep.subr.mxu0 0.0
          %375 = vmatpush1.msra.mxu0 0.0
          %376 = vmatprep.subr.mxu0 0.0
          %377 = vmatpush1.msra.mxu0 0.0
          %378 = vmatprep.subr.mxu0 0.0
          %379 = vmatpush1.msra.mxu0 0.0
          %380 = vmatprep.subr.mxu0 0.0
          %381 = vmatpush1.msra.mxu0 0.0
          %382 = vmatprep.subr.mxu0 0.0
          %383 = vmatpush1.msra.mxu0 0.0
          %384 = vmatprep.subr.mxu0 0.0
          %385 = vmatpush1.msra.mxu0 0.0
          %386 = vmatprep.subr.mxu0 0.0
          %387 = vmatpush1.msra.mxu0 0.0
          %388 = vmatprep.subr.mxu0 0.0
          %389 = vmatpush1.msra.mxu0 0.0
          %390 = vmatprep.subr.mxu0 0.0
          %391 = vmatpush1.msra.mxu0 %v342
          %392 = vmatprep.subr.mxu0 0.0
          %393 = vmatpush2.msra.mxu0 0.0
          %394 = vmatprep.subr.mxu0 0.0
          %395 = vmatpush2.msra.mxu0 0.0
          %396 = vmatprep.subr.mxu0 0.0
          %397 = vmatpush2.msra.mxu0 0.0
          %398 = vmatprep.subr.mxu0 0.0
          %399 = vmatpush2.msra.mxu0 0.0
          %400 = vmatprep.subr.mxu0 0.0
          %401 = vmatpush2.msra.mxu0 0.0
          %402 = vmatprep.subr.mxu0 0.0
          %403 = vmatpush2.msra.mxu0 0.0
          %404 = vmatprep.subr.mxu0 0.0
          %405 = vmatpush2.msra.mxu0 0.0
          %406 = vmatprep.subr.mxu0 0.0
          %407 = vmatpush2.msra.mxu0 0.0
          %408 = vmatprep.subr.mxu0 0.0
          %409 = vmatpush2.msra.mxu0 0.0
          %410 = vmatprep.subr.mxu0 0.0
          %411 = vmatpush2.msra.mxu0 0.0
          %412 = vmatprep.subr.mxu0 0.0
          %413 = vmatpush2.msra.mxu0 0.0
          %414 = vmatprep.subr.mxu0 0.0
          %415 = vmatpush2.msra.mxu0 0.0
          %416 = vmatprep.subr.mxu0 0.0
          %417 = vmatpush2.msra.mxu0 0.0
          %418 = vmatprep.subr.mxu0 0.0
          %419 = vmatpush2.msra.mxu0 0.0
          %420 = vmatprep.subr.mxu0 0.0
          %421 = vmatpush2.msra.mxu0 0.0
          %422 = vmatprep.subr.mxu0 0.0
          %423 = vmatpush2.msra.mxu0 0.0
          %424 = vmatprep.mubr.f32.mxu0 0.0
          %425 = vmatmul.mubr.f32.gmra.mxu0 %v358
          %v426 = vpop.f32.mrf.mxu0
          %v427 = vadd.f32 0.0, %v426
          %v428 = vpop.f32.mrf.mxu0
          %429 = vdwg.mxu0
          %v430 = vmul.f32 %v342, %v342
          %431 = vmatprep.subr.mxu0 0.0
          %432 = vmatpush1.msra.mxu0 0.0
          %433 = vmatprep.subr.mxu0 0.0
          %434 = vmatpush1.msra.mxu0 0.0
          %435 = vmatprep.subr.mxu0 0.0
          %436 = vmatpush1.msra.mxu0 0.0
          %437 = vmatprep.subr.mxu0 0.0
          %438 = vmatpush1.msra.mxu0 0.0
          %439 = vmatprep.subr.mxu0 0.0
          %440 = vmatpush1.msra.mxu0 0.0
          %441 = vmatprep.subr.mxu0 0.0
          %442 = vmatpush1.msra.mxu0 0.0
          %443 = vmatprep.subr.mxu0 0.0
          %444 = vmatpush1.msra.mxu0 0.0
          %445 = vmatprep.subr.mxu0 0.0
          %446 = vmatpush1.msra.mxu0 0.0
          %447 = vmatprep.subr.mxu0 0.0
          %448 = vmatpush1.msra.mxu0 0.0
          %449 = vmatprep.subr.mxu0 0.0
          %450 = vmatpush1.msra.mxu0 0.0
          %451 = vmatprep.subr.mxu0 0.0
          %452 = vmatpush1.msra.mxu0 0.0
          %453 = vmatprep.subr.mxu0 0.0
          %454 = vmatpush1.msra.mxu0 0.0
          %455 = vmatprep.subr.mxu0 0.0
          %456 = vmatpush1.msra.mxu0 0.0
          %457 = vmatprep.subr.mxu0 0.0
          %458 = vmatpush1.msra.mxu0 0.0
          %459 = vmatprep.subr.mxu0 0.0
          %460 = vmatpush1.msra.mxu0 0.0
          %461 = vmatprep.subr.mxu0 0.0
          %462 = vmatpush1.msra.mxu0 %v430
          %463 = vmatprep.subr.mxu0 0.0
          %464 = vmatpush2.msra.mxu0 0.0
          %465 = vmatprep.subr.mxu0 0.0
          %466 = vmatpush2.msra.mxu0 0.0
          %467 = vmatprep.subr.mxu0 0.0
          %468 = vmatpush2.msra.mxu0 0.0
          %469 = vmatprep.subr.mxu0 0.0
          %470 = vmatpush2.msra.mxu0 0.0
          %471 = vmatprep.subr.mxu0 0.0
          %472 = vmatpush2.msra.mxu0 0.0
          %473 = vmatprep.subr.mxu0 0.0
          %474 = vmatpush2.msra.mxu0 0.0
          %475 = vmatprep.subr.mxu0 0.0
          %476 = vmatpush2.msra.mxu0 0.0
          %477 = vmatprep.subr.mxu0 0.0
          %478 = vmatpush2.msra.mxu0 0.0
          %479 = vmatprep.subr.mxu0 0.0
          %480 = vmatpush2.msra.mxu0 0.0
          %481 = vmatprep.subr.mxu0 0.0
          %482 = vmatpush2.msra.mxu0 0.0
          %483 = vmatprep.subr.mxu0 0.0
          %484 = vmatpush2.msra.mxu0 0.0
          %485 = vmatprep.subr.mxu0 0.0
          %486 = vmatpush2.msra.mxu0 0.0
          %487 = vmatprep.subr.mxu0 0.0
          %488 = vmatpush2.msra.mxu0 0.0
          %489 = vmatprep.subr.mxu0 0.0
          %490 = vmatpush2.msra.mxu0 0.0
          %491 = vmatprep.subr.mxu0 0.0
          %492 = vmatpush2.msra.mxu0 0.0
          %493 = vmatprep.subr.mxu0 0.0
          %494 = vmatpush2.msra.mxu0 0.0
          %495 = vmatprep.mubr.f32.mxu0 0.0
          %496 = vmatmul.mubr.f32.gmra.mxu0 %v358
          %v497 = vpop.f32.mrf.mxu0
          %v498 = vadd.f32 0.0, %v497
          %v499 = vpop.f32.mrf.mxu0
          %500 = vdwg.mxu0
          %v501 = vld [vmem:[#allocation2] sm:$0x3]
          %v503 = vrot.slane %v498, 7
          %vm505 = vcmask 1040384
          %v506 = vsel %vm505, %v427, %v503
          %v507 = vadd.f32 %v501, %v506
          %508 = vst [vmem:[#allocation2] sm:$0x3] %v507
          // Predicated region
          $region57: #{tpu_custom_call.1} parent=51 // pred_check
            %p509 = pneg %p351
          $region58: #{tpu_custom_call.1} parent=51 // pred_check_branch
            %511 = sbr.rel (%p509) target = $region60
          $region59: #{tpu_custom_call.1} parent=51 // pred_region
            %v512 = vld [vmem:[#allocation2] sm:$0x3]
            %v513 = vmul.f32 %v512, 0.125
            %v514 = vmul.f32 %v513, %v513
            %v516 = vrot.slane %v514, 7
            %v518 = vsub.f32 %v513, %v516
            %v519 = vmax.f32 %v518, 0.0
            %v520 = vadd.f32 %v519, 1e-05
            %v521 = vrsqrt.pop %v520
            %v522 = vld [vmem:[%s3] sm:$0x3]
            %v524 = vrot.slane %v521, 1
            %v526 = vmul.f32 %v522, %v524
            %v527 = vmul.f32 %v513, %v526
            %v529 = vrot.slane %v527, 7
            %v531 = vsub.f32 %v522, %v529
            %v532 = vsel %vm505, %v526, %v531
            %533 = vst [vmem:[#allocation3] sm:$0x3] %v532
          $region60: #{tpu_custom_call.1} parent=51 // pred_fallthru
            _
        $region52: #{tpu_custom_call.1} parent=35 // pred_fallthru
          _
        %p534 = scmp.eq.s32.totalorder %s24, 1
        // Predicated region
        $region61: #{tpu_custom_call.1} parent=35 // pred_check
          %p535 = pneg %p534
        $region62: #{tpu_custom_call.1} parent=35 // pred_check_branch
          %537 = sbr.rel (%p535) target = $region64
        $region63: #{tpu_custom_call.1} parent=35 // pred_region
          %v538 = vld [vmem:[#allocation3] sm:$0x3]
          %v539 = vlaneseq
          %v540 = vshrl.u32 %v539, 7
          %v541 = vsub.s32 0, %v540
          %v542 = vrot.slane %v538, %v541
          %v543 = vmul.f32 %v342, %v542
          %v544 = vlaneseq
          %v545 = vshrl.u32 %v544, 7
          %v546 = vsub.s32 1, %v545
          %v547 = vrot.slane %v538, %v546
          %v548 = vadd.f32 %v543, %v547
          %v549 = vmax.f32 %v548, 0.0
          %v550 = vpack.c.bf16 %v549, %v549
          %v551 = vld [vmem:[#allocation9] sm:$0xf]
          %v552 = vld [vmem:[#allocation9 + $0x4] sm:$0xf]
          %v553 = vld [vmem:[#allocation9 + $0x8] sm:$0xf]
          %v554 = vld [vmem:[#allocation9 + $0xc] sm:$0xf]
          %v555 = vld [vmem:[#allocation9 + $0x10] sm:$0xf]
          %v556 = vld [vmem:[#allocation9 + $0x14] sm:$0xf]
          %v557 = vld [vmem:[#allocation9 + $0x18] sm:$0xf]
          %v558 = vld [vmem:[#allocation9 + $0x1c] sm:$0xf]
          %v559 = vld [vmem:[#allocation9 + $0x20] sm:$0xf]
          %v560 = vld [vmem:[#allocation9 + $0x24] sm:$0xf]
          %v561 = vld [vmem:[#allocation9 + $0x28] sm:$0xf]
          %v562 = vld [vmem:[#allocation9 + $0x2c] sm:$0xf]
          %v563 = vld [vmem:[#allocation9 + $0x30] sm:$0xf]
          %v564 = vld [vmem:[#allocation9 + $0x34] sm:$0xf]
          %v565 = vld [vmem:[#allocation9 + $0x38] sm:$0xf]
          %v566 = vld [vmem:[#allocation9 + $0x3c] sm:$0xf]
          %v583 = vunpack.c.l.b16 %v551
          %v584 = vunpack.c.l.b16 %v552
          %v585 = vunpack.c.l.b16 %v553
          %v586 = vunpack.c.l.b16 %v554
          %v587 = vunpack.c.l.b16 %v555
          %v588 = vunpack.c.l.b16 %v556
          %v589 = vunpack.c.l.b16 %v557
          %v590 = vunpack.c.l.b16 %v558
          %v591 = vunpack.c.l.b16 %v559
          %v592 = vunpack.c.l.b16 %v560
          %v593 = vunpack.c.l.b16 %v561
          %v594 = vunpack.c.l.b16 %v562
          %v595 = vunpack.c.l.b16 %v563
          %v596 = vunpack.c.l.b16 %v564
          %v597 = vunpack.c.l.b16 %v565
          %v598 = vunpack.c.l.b16 %v566
          %v599 = vpack.c.b16 %v584, %v583
          %v600 = vpack.c.b16 %v586, %v585
          %v601 = vpack.c.b16 %v588, %v587
          %v602 = vpack.c.b16 %v590, %v589
          %v603 = vpack.c.b16 %v592, %v591
          %v604 = vpack.c.b16 %v594, %v593
          %v605 = vpack.c.b16 %v596, %v595
          %v606 = vpack.c.b16 %v598, %v597
          %615 = vmatprep.subr.bf16.mxu0 0
          %616 = vmatpush1.bf16.msra.mxu0 %v606
          %617 = vmatprep.subr.bf16.mxu0 0
          %618 = vmatpush1.bf16.msra.mxu0 %v605
          %619 = vmatprep.subr.bf16.mxu0 0
          %620 = vmatpush1.bf16.msra.mxu0 %v604
          %621 = vmatprep.subr.bf16.mxu0 0
          %622 = vmatpush1.bf16.msra.mxu0 %v603
          %623 = vmatprep.subr.bf16.mxu0 0
          %624 = vmatpush1.bf16.msra.mxu0 %v602
          %625 = vmatprep.subr.bf16.mxu0 0
          %626 = vmatpush1.bf16.msra.mxu0 %v601
          %627 = vmatprep.subr.bf16.mxu0 0
          %628 = vmatpush1.bf16.msra.mxu0 %v600
          %629 = vmatprep.subr.bf16.mxu0 0
          %630 = vmatpush1.bf16.msra.mxu0 %v599
          %631 = vmatprep.subr.bf16.mxu0 0
          %632 = vmatpush2.bf16.msra.mxu0 0
          %633 = vmatprep.subr.bf16.mxu0 0
          %634 = vmatpush2.bf16.msra.mxu0 0
          %635 = vmatprep.subr.bf16.mxu0 0
          %636 = vmatpush2.bf16.msra.mxu0 0
          %637 = vmatprep.subr.bf16.mxu0 0
          %638 = vmatpush2.bf16.msra.mxu0 0
          %639 = vmatprep.subr.bf16.mxu0 0
          %640 = vmatpush2.bf16.msra.mxu0 0
          %641 = vmatprep.subr.bf16.mxu0 0
          %642 = vmatpush2.bf16.msra.mxu0 0
          %643 = vmatprep.subr.bf16.mxu0 0
          %644 = vmatpush2.bf16.msra.mxu0 0
          %645 = vmatprep.subr.bf16.mxu0 0
          %646 = vmatpush2.bf16.msra.mxu0 0
          %647 = vmatprep.mubr.bf16.mxu0 0
          %648 = vmatmul.mubr.bf16.gmra.mxu0 %v550
          %v649 = vpop.f32.mrf.mxu0
          %v650 = vadd.f32 0.0, %v649
          %v651 = vpop.f32.mrf.mxu0
          %v652 = vpop.f32.mrf.mxu0
          %v653 = vpop.f32.mrf.mxu0
          %654 = vdwg.mxu0
          %655 = vst [vmem:[%s238] sm:$0xff] %v650
        $region64: #{tpu_custom_call.1} parent=35 // pred_fallthru
          _
        %s656 = sand.u32 %s131, 1
        %s657 = scalar_lea.sflag [#allocation6], %s656
        %s658 = sand.u32 %s131, 1
        %s659 = smul.addr %s658, 8
        %s660 = scalar_lea.vmem [#allocation10], %s659
        // Predicated region
        $region65: #{tpu_custom_call.1} parent=35 // pred_check
          %p661 = pneg %p141
        $region66: #{tpu_custom_call.1} parent=35 // pred_check_branch
          %663 = sbr.rel (%p661) target = $region68
        $region67: #{tpu_custom_call.1} parent=35 // pred_region
          %s664 = smul.u32 %s24, %s25
          %s666 = ssub.s32 128, 128
          %667 = vsyncadd %s657, %s666
          %s668 = smul.addr %s664, 128
          %s669 = scalar_lea.hbm %s4, %s668
          %s671 = sshll.u32 %s660, 4
          %s672 = int_to_ptr.vmem [resolvable:$true] %s671
          %674 = dma.vmem_to_hbm [thread:$0]  %s672, 128, %s669, %s657
        $region68: #{tpu_custom_call.1} parent=35 // pred_fallthru
          _
      $region36: #{tpu_custom_call.1} parent=5 // pred_fallthru
        _
      %p675 = scmp.le.s32.totalorder 2, %s15
      // Predicated region
      $region69: #{tpu_custom_call.1} parent=5 // pred_check
        %p676 = pneg %p675
      $region70: #{tpu_custom_call.1} parent=5 // pred_check_branch
        %678 = sbr.rel (%p676) target = $region72
      $region71: #{tpu_custom_call.1} parent=5 // pred_region
        %s679 = ssub.s32 %s15, 2
        // Predicated region
        $region73: #{tpu_custom_call.1} parent=71 // pred_check
          %p680 = pneg %p147
        $region74: #{tpu_custom_call.1} parent=71 // pred_check_branch
          %682 = sbr.rel (%p680) target = $region76
        $region75: #{tpu_custom_call.1} parent=71 // pred_region
          %s683 = sand.u32 %s132, 1
          %s684 = scalar_lea.sflag [#allocation6], %s683
          %s685 = sand.u32 %s132, 1
          %s686 = smul.addr %s685, 8
          %s687 = scalar_lea.vmem [#allocation10], %s686
          %688 = dma.done %s684, 128
        $region76: #{tpu_custom_call.1} parent=71 // pred_fallthru
          _
      $region72: #{tpu_custom_call.1} parent=5 // pred_fallthru
        _
    $region6: #{tpu_custom_call.1} parent=1 // loop_footer
      %s19 = sadd.s32 1, %s15
    $region7: #{tpu_custom_call.1} parent=1 // loop_footer_branch
      %14 = sbr.rel target = $region3
    $region8: #{tpu_custom_call.1} parent=1 // loop_exit
      _
    %689 = vsyncpa [#allocation5], 1
    %s690 = scalar_lea.sflag [#allocation5], 1
    %691 = vsyncpa %s690, 1
    %692 = vsyncpa [#allocation8], 1
    %693 = vsyncpa [#allocation6], 1
    %s694 = scalar_lea.sflag [#allocation6], 1
    %695 = vsyncpa %s694, 1

</llo_original>
